<compile_context>
chip_gen: v6e
topology: v6e:2x2x1
jax: 0.10.0
libtpu: 0.0.40
codegen_flags: <defaults>
</compile_context>

<pallas_src>
import functools

import jax
import jax.numpy as jnp
from jax.experimental import pallas as pl
from jax.experimental.pallas import tpu as pltpu

_LANES = 128


def _logish_kernel(x_ref, o_ref, *, alpha, beta, compute_dtype):
    # Elementwise body; compute in `compute_dtype`, preserve output dtype.
    x = x_ref[...].astype(compute_dtype)
    if compute_dtype == jnp.float32:
        s = jax.nn.sigmoid(beta * x)          # one tanh (EUP) + VPU ops
        y = (alpha * x) * jnp.log1p(s)        # one log (EUP) + VPU muls
    else:
        # bf16-native path (v6e/v7x): simple exp/log formulation stays in bf16.
        s = 1.0 / (1.0 + jnp.exp(-(beta * x)))
        y = (alpha * x) * jnp.log(1.0 + s)
    o_ref[...] = y.astype(o_ref.dtype)


def _vmem_capacity_bytes():
    try:
        return int(pltpu.get_tpu_info().vmem_capacity_bytes)
    except Exception:
        return 64 * 1024 * 1024  # conservative (v7x-class) fallback


def _bf16_native():
    try:
        kind = jax.devices()[0].device_kind.lower()
    except Exception:
        return False
    return any(tag in kind for tag in ("v6", "v7", "7x"))


def logish(x, alpha: float = 1.0, beta: float = 1.0, *, block_rows=None):
    """Elementwise Logish. x: any shape (e.g. NCHW). Returns same shape/dtype."""
    orig_shape = x.shape
    orig_dtype = x.dtype
    n = int(x.size)
    if n == 0:
        return x

    itemsize = int(jnp.dtype(orig_dtype).itemsize)
    # Packed sublane tile height: 8 for 4-byte, 16 for 2-byte, 32 for 1-byte dtypes.
    sub = max(8, 32 // max(itemsize, 1))

    # Compute dtype: bf16 chain on bf16-native parts (v6e/v7x), else f32.
    compute_dtype = jnp.float32
    if orig_dtype == jnp.bfloat16 and _bf16_native():
        compute_dtype = jnp.bfloat16
    compute_itemsize = int(jnp.dtype(compute_dtype).itemsize)

    # Generation-aware block / VMEM budgets.
    vmem_cap = _vmem_capacity_bytes()
    if vmem_cap <= 64 * 1024 * 1024:
        # v7x-class: 64 MiB physical VMEM per TensorCore.
        target_block_bytes = 8 * 1024 * 1024
        vmem_cap_limit = 56 * 1024 * 1024
    else:
        # v5e / v6e: 128 MiB physical VMEM -> fewer, larger grid steps.
        target_block_bytes = 16 * 1024 * 1024
        vmem_cap_limit = 96 * 1024 * 1024

    # Flatten to a lane-dense (rows, 128) slab. Pad only when required.
    padded_n = pl.cdiv(n, _LANES) * _LANES
    padded_n = max(padded_n, sub * _LANES)
    pad = padded_n - n

    x_flat = jnp.ravel(x)
    if pad:
        # TODO(synk): replace this pad + trailing slice (2 extra HBM passes on the
        # ragged-numel path) with in-kernel tail masking over a raw 1D HBM ref.
        x_flat = jnp.pad(x_flat, (0, pad))
    rows = padded_n // _LANES
    x2d = x_flat.reshape(rows, _LANES)

    # Per-block-row VMEM cost: 2x double-buffered input blocks + 2x output blocks
    # + ~3 block-sized compute-dtype temporaries of the elementwise chain.
    bytes_per_row = _LANES * (2 * itemsize + 2 * itemsize + 3 * compute_itemsize)
    rows_vmem_max = max(sub, int((vmem_cap_limit - (4 << 20)) // bytes_per_row))

    if block_rows is None:
        tr = target_block_bytes // (_LANES * itemsize)
        tr = min(tr, rows_vmem_max, rows)
        tr = max(sub, (tr // sub) * sub)
        # Megacore: when the grid would be 1-3 steps, force >=2 roughly-even
        # blocks so both v7x TensorCores get work (no-op cost elsewhere).
        g = pl.cdiv(rows, tr)
        if g <= 3 and rows > sub:
            g_target = 2 if g <= 2 else 4
            tr = max(sub, pl.cdiv(pl.cdiv(rows, g_target), sub) * sub)
    else:
        tr = max(sub, (min(int(block_rows), rows_vmem_max) // sub) * sub)

    grid = (pl.cdiv(rows, tr),)

    # Scoped-VMEM request: actual buffer+temp footprint plus headroom, floored at
    # 32 MiB and capped per generation (56 MiB on v7x, 96 MiB on v5e/v6e).
    vmem_limit = int(min(vmem_cap_limit,
                         max(32 << 20, tr * bytes_per_row + (4 << 20))))

    out2d = pl.pallas_call(
        functools.partial(_logish_kernel, alpha=float(alpha), beta=float(beta),
                          compute_dtype=compute_dtype),
        out_shape=jax.ShapeDtypeStruct((rows, _LANES), orig_dtype),
        grid_spec=pltpu.PrefetchScalarGridSpec(
            num_scalar_prefetch=0,
            grid=grid,
            in_specs=[pl.BlockSpec((tr, _LANES), lambda i: (i, 0))],
            out_specs=pl.BlockSpec((tr, _LANES), lambda i: (i, 0)),
        ),
        compiler_params=pltpu.CompilerParams(
            dimension_semantics=("parallel",),
            vmem_limit_bytes=vmem_limit,
        ),
    )(x2d)

    if pad:
        return out2d.reshape(-1)[:n].reshape(orig_shape)
    return out2d.reshape(orig_shape)


def _logish_ref(x, alpha=1.0, beta=1.0):
    xf = x.astype(jnp.float32)
    return (xf * alpha * jnp.log1p(jax.nn.sigmoid(beta * xf))).astype(x.dtype)


if __name__ == "__main__":
    key = jax.random.PRNGKey(0)

    # Primary case: NCHW f32, as the PyTorch module would typically see.
    x = jax.random.normal(key, (2, 4, 16, 16), dtype=jnp.float32)
    y = logish(x, alpha=1.0, beta=1.0)
    jax.block_until_ready(y)
    y_ref = _logish_ref(x, 1.0, 1.0)
    assert y.shape == x.shape and y.dtype == x.dtype
    assert jnp.allclose(y, y_ref, atol=1e-5, rtol=1e-5), "f32 mismatch vs reference"

    # Ragged grid path: 100 rows with block_rows=64 -> 2 blocks, masked tail,
    # plus non-default alpha/beta.
    x2 = jax.random.normal(jax.random.fold_in(key, 1), (100, 128), dtype=jnp.float32)
    y2 = logish(x2, alpha=0.8, beta=1.7, block_rows=64)
    jax.block_until_ready(y2)
    y2_ref = _logish_ref(x2, 0.8, 1.7)
    assert jnp.allclose(y2, y2_ref, atol=1e-5, rtol=1e-5), "ragged-grid mismatch"

    # Padded path + packed dtype: numel not a multiple of 128, bf16 in/out
    # (exercises the bf16 compute path on v6e/v7x, f32 path on v5e).
    x3 = jax.random.normal(jax.random.fold_in(key, 2), (3, 5, 7, 11), dtype=jnp.bfloat16)
    y3 = logish(x3, alpha=1.0, beta=2.0)
    jax.block_until_ready(y3)
    y3_ref = _logish_ref(x3, 1.0, 2.0)
    assert y3.shape == x3.shape and y3.dtype == x3.dtype
    assert jnp.allclose(y3.astype(jnp.float32), y3_ref.astype(jnp.float32),
                        atol=2e-2, rtol=2e-2), "bf16 mismatch vs reference"

    print("KERNEL_OK")
</pallas_src>

<mosaic_0001>
module attributes {stable_mosaic.version = 11 : i64} {
  func.func @_logish_kernel(%arg0: i32, %arg1: memref<8x128xf32, #tpu.memory_space<vmem>>, %arg2: memref<8x128xf32, #tpu.memory_space<vmem>>) attributes {dimension_semantics = [#tpu.dimension_semantics<parallel>], iteration_bounds = array<i64: 2>, scalar_prefetch = 0 : i64, scratch_operands = 0 : i64, tpu.core_type = #tpu.core_type<tc>, window_params = [{transform_indices = @transform_0, window_bounds = array<i64: 8, 128>}, {transform_indices = @transform_1, window_bounds = array<i64: 8, 128>}]} {
    %c0 = arith.constant 0 : index
    %c0_0 = arith.constant 0 : index
    %0 = vector.load %arg1[%c0, %c0_0] : memref<8x128xf32, #tpu.memory_space<vmem>>, vector<8x128xf32>
    %cst = arith.constant 1.000000e+00 : f32
    %1 = vector.broadcast %cst : f32 to vector<8x128xf32>
    %2 = arith.mulf %1, %0 : vector<8x128xf32>
    %3 = arith.negf %2 : vector<8x128xf32>
    %4 = math.exp %3 : vector<8x128xf32>
    %cst_1 = arith.constant 1.000000e+00 : f32
    %5 = vector.broadcast %cst_1 : f32 to vector<8x128xf32>
    %6 = arith.addf %5, %4 : vector<8x128xf32>
    %7 = arith.divf %5, %6 : vector<8x128xf32>
    %cst_2 = arith.constant 1.000000e+00 : f32
    %8 = vector.broadcast %cst_2 : f32 to vector<8x128xf32>
    %9 = arith.mulf %8, %0 : vector<8x128xf32>
    %10 = math.log1p %7 : vector<8x128xf32>
    %11 = arith.mulf %9, %10 : vector<8x128xf32>
    %c0_3 = arith.constant 0 : index
    %c0_4 = arith.constant 0 : index
    %12 = vector.load %arg2[%c0_3, %c0_4] : memref<8x128xf32, #tpu.memory_space<vmem>>, vector<8x128xf32>
    tpu.vector_store %arg2[%c0_3, %c0_4], %11 {strides = array<i32>} : memref<8x128xf32, #tpu.memory_space<vmem>>, vector<8x128xf32>,
    return
  }
  func.func @transform_0(%arg0: i32) -> (i32, i32) {
    %c0_i32 = arith.constant 0 : i32
    %c0_i32_0 = arith.constant 0 : i32
    return %arg0, %c0_i32 : i32, i32
  }
  func.func @transform_1(%arg0: i32) -> (i32, i32) {
    %c0_i32 = arith.constant 0 : i32
    %c0_i32_0 = arith.constant 0 : i32
    return %arg0, %c0_i32 : i32, i32
  }
}

</mosaic_0001>

<llo_original>
// kernel: tpu_custom_call.1
$region0: #{tpu_custom_call.1}
  #allocation0 [shape = 'u32[]', space=smem, size = 0x4, offset = 0x4, fixed_abs, tag = 'smem constant byte address 0x4 - core index']
  #allocation1 [shape = 'u32[144,128]{1,0:T(1,128)}', space=vmem, size = 0x12000, scoped, tag = 'internal scratch']
  %s0 = inlined_call_operand.hbm [shape: f32[16,128], index: 0, kind: input, shape index: {}]
  %s1 = inlined_call_operand.hbm [shape: f32[16,128], index: 1, kind: output, shape index: {}]
  %s2 = sld [smem:[#allocation0]]
  $region41: #{tpu_custom_call.1} parent=0
    _
  %s4 = ssub.s32 1, %s2
  %s5 = scalar_select 0, %s4, %s2
  $region1: #{tpu_custom_call.1} parent=0
    #allocation2 [shape = 'u8[8192]{0}', space=vmem, size = 0x2000, scoped, tag = 'input window, operand 0']
    #allocation3 [shape = 's32[2]{0}', space=sflag, size = 0x8, scoped, tag = 'scoped memory for tpu_custom_call.1']
    #allocation4 [shape = 's32[2]{0}', space=sflag, size = 0x8, scoped, tag = 'scoped memory for tpu_custom_call.1']
    #allocation5 [shape = 'u8[8192]{0}', space=vmem, size = 0x2000, scoped, tag = 'output window, operand 0']
    %6 = vsyncpa [#allocation3], 0
    %s7 = scalar_lea.sflag [#allocation3], 1
    %8 = vsyncpa %s7, 0
    %9 = vsyncpa [#allocation4], 0
    %s10 = scalar_lea.sflag [#allocation4], 1
    %11 = vsyncpa %s10, 0
    loop: start=0, step=1, limit=4
    $region2: #{tpu_custom_call.1} parent=1 // loop_pre_header
      _
    $region3: #{tpu_custom_call.1} parent=1 // loop_header
      %s13 = sphi 0, %s17
      %p14 = scmp.ge.s32.totalorder %s13, 4
      %s23 = sphi 0, %s25
      %s26 = sphi 0, %s23
      %s27 = sphi 0, %s26
      %s43 = sphi 0, %s27
      %s49 = sphi 0, %s51
      %s52 = sphi 0, %s49
      %s53 = sphi 0, %s52
      %s69 = sphi 0, %s53
    $region4: #{tpu_custom_call.1} parent=1 // loop_header_branch
      %16 = sbr.rel (%p14) target = $region8
    $region5: #{tpu_custom_call.1} parent=1 // loop_body
      %s18 = ssub.s32 %s13, 1
      %s19 = ssub.s32 %s13, 2
      %s20 = sadd.s32 %s13, 1
      %s21 = ssub.s32 %s13, %s20
      %p22 = scmp.eq.s32.totalorder %s21, 0
      %s24 = sadd.s32 %s23, 1
      %s25 = scalar_select %p22, %s23, %s24
      %p28 = pneg %p22
      %p29 = scmp.eq.s32.totalorder %s13, 1
      %p30 = por %p28, %p29
      %p31 = scmp.ne.s32.totalorder %s23, %s26
      %p32 = scmp.eq.s32.totalorder %s13, 0
      %p33 = por %p31, %p32
      %p34 = scmp.ne.s32.totalorder %s23, %s26
      %p35 = scmp.eq.s32.totalorder %s18, 1
      %p36 = por %p34, %p35
      %p37 = scmp.ne.s32.totalorder %s26, %s27
      %p38 = scmp.eq.s32.totalorder %s18, 0
      %p39 = por %p37, %p38
      %p40 = scmp.ne.s32.totalorder %s26, %s27
      %p41 = scmp.eq.s32.totalorder %s19, 1
      %p42 = por %p40, %p41
      %p44 = scmp.ne.s32.totalorder %s27, %s43
      %p45 = scmp.eq.s32.totalorder %s19, 0
      %p46 = por %p44, %p45
      %s47 = ssub.s32 %s13, %s20
      %p48 = scmp.eq.s32.totalorder %s47, 0
      %s50 = sadd.s32 %s49, 1
      %s51 = scalar_select %p48, %s49, %s50
      %p54 = pneg %p48
      %p55 = scmp.eq.s32.totalorder %s13, 1
      %p56 = por %p54, %p55
      %p57 = scmp.ne.s32.totalorder %s49, %s52
      %p58 = scmp.eq.s32.totalorder %s13, 0
      %p59 = por %p57, %p58
      %p60 = scmp.ne.s32.totalorder %s49, %s52
      %p61 = scmp.eq.s32.totalorder %s18, 1
      %p62 = por %p60, %p61
      %p63 = scmp.ne.s32.totalorder %s52, %s53
      %p64 = scmp.eq.s32.totalorder %s18, 0
      %p65 = por %p63, %p64
      %p66 = scmp.ne.s32.totalorder %s52, %s53
      %p67 = scmp.eq.s32.totalorder %s19, 1
      %p68 = por %p66, %p67
      %p70 = scmp.ne.s32.totalorder %s53, %s69
      %p71 = scmp.eq.s32.totalorder %s19, 0
      %p72 = por %p70, %p71
      %p73 = scmp.le.s32.totalorder 1, %s13
      %p74 = scmp.lt.s32.totalorder %s13, 3
      %p75 = pnand %p73, %p74
      %p76 = pneg %p75
      // Predicated region
      $region9: #{tpu_custom_call.1} parent=5 // pred_check
        _
      $region10: #{tpu_custom_call.1} parent=5 // pred_check_branch
        %78 = sbr.rel (%p75) target = $region12
      $region11: #{tpu_custom_call.1} parent=5 // pred_region
        %s79 = ssub.s32 %s13, 1
      $region12: #{tpu_custom_call.1} parent=5 // pred_fallthru
        _
      %p80 = scmp.lt.s32.totalorder %s13, 2
      // Predicated region
      $region13: #{tpu_custom_call.1} parent=5 // pred_check
        %p81 = pneg %p80
      $region14: #{tpu_custom_call.1} parent=5 // pred_check_branch
        %83 = sbr.rel (%p81) target = $region16
      $region15: #{tpu_custom_call.1} parent=5 // pred_region
        // Predicated region
        $region17: #{tpu_custom_call.1} parent=15 // pred_check
          %p84 = pneg %p33
        $region18: #{tpu_custom_call.1} parent=15 // pred_check_branch
          %86 = sbr.rel (%p84) target = $region20
        $region19: #{tpu_custom_call.1} parent=15 // pred_region
          %s87 = sand.u32 %s23, 1
          %s88 = scalar_lea.sflag [#allocation3], %s87
          %s89 = sand.u32 %s23, 1
          %s90 = smul.addr %s89, 8
          %s91 = scalar_lea.vmem [#allocation2], %s90
          %s93 = ssub.s32 128, 128
          %94 = vsyncadd %s88, %s93
          %s95 = smul.addr %s13, 128
          %s96 = scalar_lea.hbm %s0, %s95
          %s98 = sshll.u32 %s91, 4
          %s99 = int_to_ptr.vmem [resolvable:$true] %s98
          %101 = dma.hbm_to_vmem [thread:$0]  %s96, 128, %s99, %s88
        $region20: #{tpu_custom_call.1} parent=15 // pred_fallthru
          _
      $region16: #{tpu_custom_call.1} parent=5 // pred_fallthru
        _
      %p102 = scmp.le.s32.totalorder 1, %s13
      %p103 = scmp.lt.s32.totalorder %s13, 3
      %p104 = pnand %p102, %p103
      %p105 = pneg %p104
      // Predicated region
      $region21: #{tpu_custom_call.1} parent=5 // pred_check
        _
      $region22: #{tpu_custom_call.1} parent=5 // pred_check_branch
        %107 = sbr.rel (%p104) target = $region24
      $region23: #{tpu_custom_call.1} parent=5 // pred_region
        %s108 = ssub.s32 %s13, 1
        %s109 = sand.u32 %s26, 1
        %s110 = scalar_lea.sflag [#allocation3], %s109
        %s111 = sand.u32 %s26, 1
        %s112 = smul.addr %s111, 8
        %s113 = scalar_lea.vmem [#allocation2], %s112
        // Predicated region
        $region25: #{tpu_custom_call.1} parent=23 // pred_check
          %p114 = pneg %p39
        $region26: #{tpu_custom_call.1} parent=23 // pred_check_branch
          %116 = sbr.rel (%p114) target = $region28
        $region27: #{tpu_custom_call.1} parent=23 // pred_region
          %117 = dma.done %s110, 128
        $region28: #{tpu_custom_call.1} parent=23 // pred_fallthru
          _
        %s118 = sand.u32 %s26, 1
        %s119 = scalar_lea.sflag [#allocation3], %s118
        %s120 = sand.u32 %s26, 1
        %s121 = smul.addr %s120, 8
        %s122 = scalar_lea.vmem [#allocation2], %s121
        %p123 = pneg %p39
        %p124 = pneg %p36
        %p125 = pneg %p65
        %p126 = pneg %p62
        %s127 = sand.u32 %s52, 1
        %s128 = scalar_lea.sflag [#allocation4], %s127
        %s129 = sand.u32 %s52, 1
        %s130 = smul.addr %s129, 8
        %s131 = scalar_lea.vmem [#allocation5], %s130
        %v132 = vld [vmem:[%s113] sm:$0xff]
        %v133 = vxor.u32 %v132, 2147483648
        %v134 = vmul.f32 %v133, 1.442695
        %v135 = vpow.pop %v134
        %v136 = vadd.f32 %v135, 1.0
        %v137 = vrcp.pop %v136
        %v138 = vmul.f32 1.0, %v137
        %v139 = vadd.f32 %v138, 1.0
        %v140 = vlog2.pop %v139
        %v141 = vmul.f32 %v140, 0.6931472
        %v142 = vmul.f32 -0.5, %v138
        %v143 = vadd.f32 %v142, 1.0
        %v144 = vmul.f32 %v143, %v138
        %v145 = vand.u32 2147483647, %v138
        %vm146 = vcmp.lt.f32.partialorder %v145, 0.0004427343
        %v147 = vsel %vm146, %v144, %v141
        %v148 = vmul.f32 %v132, %v147
        %149 = vst [vmem:[%s131] sm:$0xff] %v148
        %s150 = sand.u32 %s52, 1
        %s151 = scalar_lea.sflag [#allocation4], %s150
        %s152 = sand.u32 %s52, 1
        %s153 = smul.addr %s152, 8
        %s154 = scalar_lea.vmem [#allocation5], %s153
        // Predicated region
        $region29: #{tpu_custom_call.1} parent=23 // pred_check
          %p155 = pneg %p62
        $region30: #{tpu_custom_call.1} parent=23 // pred_check_branch
          %157 = sbr.rel (%p155) target = $region32
        $region31: #{tpu_custom_call.1} parent=23 // pred_region
          %s159 = ssub.s32 128, 128
          %160 = vsyncadd %s151, %s159
          %s161 = smul.addr %s18, 128
          %s162 = scalar_lea.hbm %s1, %s161
          %s164 = sshll.u32 %s154, 4
          %s165 = int_to_ptr.vmem [resolvable:$true] %s164
          %167 = dma.vmem_to_hbm [thread:$0]  %s165, 128, %s162, %s151
        $region32: #{tpu_custom_call.1} parent=23 // pred_fallthru
          _
      $region24: #{tpu_custom_call.1} parent=5 // pred_fallthru
        _
      %p168 = scmp.le.s32.totalorder 2, %s13
      // Predicated region
      $region33: #{tpu_custom_call.1} parent=5 // pred_check
        %p169 = pneg %p168
      $region34: #{tpu_custom_call.1} parent=5 // pred_check_branch
        %171 = sbr.rel (%p169) target = $region36
      $region35: #{tpu_custom_call.1} parent=5 // pred_region
        %s172 = ssub.s32 %s13, 2
        // Predicated region
        $region37: #{tpu_custom_call.1} parent=35 // pred_check
          %p173 = pneg %p68
        $region38: #{tpu_custom_call.1} parent=35 // pred_check_branch
          %175 = sbr.rel (%p173) target = $region40
        $region39: #{tpu_custom_call.1} parent=35 // pred_region
          %s176 = sand.u32 %s53, 1
          %s177 = scalar_lea.sflag [#allocation4], %s176
          %s178 = sand.u32 %s53, 1
          %s179 = smul.addr %s178, 8
          %s180 = scalar_lea.vmem [#allocation5], %s179
          %181 = dma.done %s177, 128
        $region40: #{tpu_custom_call.1} parent=35 // pred_fallthru
          _
      $region36: #{tpu_custom_call.1} parent=5 // pred_fallthru
        _
    $region6: #{tpu_custom_call.1} parent=1 // loop_footer
      %s17 = sadd.s32 1, %s13
    $region7: #{tpu_custom_call.1} parent=1 // loop_footer_branch
      %12 = sbr.rel target = $region3
    $region8: #{tpu_custom_call.1} parent=1 // loop_exit
      _
    %182 = vsyncpa [#allocation3], 1
    %s183 = scalar_lea.sflag [#allocation3], 1
    %184 = vsyncpa %s183, 1
    %185 = vsyncpa [#allocation4], 1
    %s186 = scalar_lea.sflag [#allocation4], 1
    %187 = vsyncpa %s186, 1

</llo_original>
